<compile_context>
chip_gen: v5e
topology: v5e:2x2
jax: 0.10.0
libtpu: 0.0.40
codegen_flags: <defaults>
</compile_context>

<pallas_src>
import jax
import jax.numpy as jnp
from jax import lax
from jax.experimental import pallas as pl
from jax.experimental.pallas import tpu as pltpu


def _value_net_kernel(x_ref, w1_ref, b1_ref, w2_ref, b2_ref, w3_ref, b3_ref, o_ref):
    # x: [TB, S] f32/bf16 | w1: [S, Hp] bf16 | b1: [1, Hp] f32 | w2: [Hp, Hp] bf16
    # b2: [1, Hp] f32 | w3: [1, Hp] bf16 | b3: [1] f32 (SMEM) | o: [1, TB] f32
    x = x_ref[...].astype(jnp.bfloat16)

    h1 = jnp.dot(x, w1_ref[...], preferred_element_type=jnp.float32) + b1_ref[...]
    h1 = jnp.maximum(h1, 0.0)

    h2 = jnp.dot(h1.astype(jnp.bfloat16), w2_ref[...],
                 preferred_element_type=jnp.float32) + b2_ref[...]
    h2 = jnp.maximum(h2, 0.0)

    # fc3 as an M=1 MXU pass: (1, Hp) x (TB, Hp) contracted on Hp -> (1, TB).
    # Result is already lane-major, matching the lane-dense output store.
    v = lax.dot_general(w3_ref[...], h2.astype(jnp.bfloat16),
                        dimension_numbers=(((1,), (1,)), ((), ())),
                        preferred_element_type=jnp.float32)
    o_ref[...] = (v + b3_ref[0]).astype(o_ref.dtype)


def _round_up(a, m):
    return ((a + m - 1) // m) * m


def value_network_forward(x, params, *, block_b=512):
    """x: [B, state_dim] float32 (or bf16) -> [B, 1] float32."""
    w1, b1 = params["w1"], params["b1"]   # [S, Hp] bf16, [1, Hp] f32
    w2, b2 = params["w2"], params["b2"]   # [Hp, Hp] bf16, [1, Hp] f32
    w3, b3 = params["w3"], params["b3"]   # [1, Hp] bf16, [1] f32

    B, S = x.shape
    Hp = w1.shape[1]

    # Batch tile: large by default (amortize per-step overhead, fill the MXU M
    # dim), but clamped so there are >= 2 grid steps with 128-aligned output
    # tiles once B is large enough -- keeps both v7x TensorCores busy.  For
    # small B, use a single tile covering the whole (sublane-padded) batch.
    if B >= 2 * 128:
        TB = max(128, min(block_b, _round_up(pl.cdiv(B, 2), 128)))
        TB = _round_up(TB, 128)
    else:
        TB = _round_up(B, 8)

    grid_b = pl.cdiv(B, TB)
    B_pad = grid_b * TB
    if B_pad != B:
        x = jnp.pad(x, ((0, B_pad - B), (0, 0)))

    # Constant index_maps -> weights/biases stay VMEM-resident across steps.
    const = lambda shape: pl.BlockSpec(shape, lambda i: (0, 0))

    weight_bytes = sum(int(p.size) * p.dtype.itemsize
                       for p in (w1, b1, w2, b2, w3, b3))
    cost = pl.CostEstimate(
        flops=2 * B_pad * (S * Hp + Hp * Hp + Hp),
        transcendentals=0,
        bytes_accessed=int(x.size) * x.dtype.itemsize + B_pad * 4 + weight_bytes,
    )

    out_row = pl.pallas_call(
        _value_net_kernel,
        out_shape=jax.ShapeDtypeStruct((1, B_pad), jnp.float32),
        grid=(grid_b,),
        in_specs=[
            pl.BlockSpec((TB, S), lambda i: (i, 0)),            # x tiles streamed
            const((S, Hp)), const((1, Hp)),                     # fc1 (VMEM-resident)
            const((Hp, Hp)), const((1, Hp)),                    # fc2 (VMEM-resident)
            const((1, Hp)),                                     # fc3 weight row
            pl.BlockSpec(memory_space=pltpu.MemorySpace.SMEM),  # fc3 bias (1,) scalar
        ],
        out_specs=pl.BlockSpec((1, TB), lambda i: (0, i)),      # lane-dense output
        compiler_params=pltpu.CompilerParams(
            dimension_semantics=("parallel",)),
        cost_estimate=cost,
    )(x, w1, b1, w2, b2, w3, b3)

    return out_row.reshape(B_pad, 1)[:B]


def prepare_params(key, state_dim, hidden_dim=64, padded_hidden=128):
    """nn.Linear-equivalent params, pre-transposed to [in, out], hidden dim
    zero-padded to 128, matmul weights cast to bf16, biases kept f32."""
    H, Hp = hidden_dim, padded_hidden
    k1, k2, k3, k4, k5, k6 = jax.random.split(key, 6)
    w1 = jax.random.normal(k1, (state_dim, H), jnp.float32) * 0.1
    b1 = jax.random.normal(k2, (H,), jnp.float32) * 0.1
    w2 = jax.random.normal(k3, (H, H), jnp.float32) * 0.1
    b2 = jax.random.normal(k4, (H,), jnp.float32) * 0.1
    w3 = jax.random.normal(k5, (H,), jnp.float32) * 0.1
    b3 = jax.random.normal(k6, (1,), jnp.float32) * 0.1

    w1p = jnp.zeros((state_dim, Hp), jnp.float32).at[:, :H].set(w1)
    b1p = jnp.zeros((1, Hp), jnp.float32).at[0, :H].set(b1)
    w2p = jnp.zeros((Hp, Hp), jnp.float32).at[:H, :H].set(w2)
    b2p = jnp.zeros((1, Hp), jnp.float32).at[0, :H].set(b2)
    w3p = jnp.zeros((1, Hp), jnp.float32).at[0, :H].set(w3)

    return dict(
        w1=w1p.astype(jnp.bfloat16), b1=b1p,
        w2=w2p.astype(jnp.bfloat16), b2=b2p,
        w3=w3p.astype(jnp.bfloat16), b3=b3,
    )


def value_network_ref(x, p):
    """Pure-JAX reference for the same bf16-MXU / f32-accumulate pipeline."""
    h1 = jnp.maximum(
        jnp.dot(x.astype(jnp.bfloat16), p["w1"],
                preferred_element_type=jnp.float32) + p["b1"], 0.0)
    h2 = jnp.maximum(
        jnp.dot(h1.astype(jnp.bfloat16), p["w2"],
                preferred_element_type=jnp.float32) + p["b2"], 0.0)
    v = jnp.dot(h2.astype(jnp.bfloat16), p["w3"].T,
                preferred_element_type=jnp.float32)       # [B, 1]
    return v + p["b3"][0]


if __name__ == "__main__":
    key = jax.random.PRNGKey(0)
    kx, kp = jax.random.split(key)

    batch, state_dim, hidden_dim = 256, 16, 64
    x = jax.random.normal(kx, (batch, state_dim), jnp.float32)
    params = prepare_params(kp, state_dim, hidden_dim)

    out = jax.block_until_ready(value_network_forward(x, params))

    ref = value_network_ref(x, params)
    assert out.shape == (batch, 1), out.shape
    assert jnp.allclose(out, ref, atol=1e-3, rtol=1e-3), float(
        jnp.max(jnp.abs(out - ref)))

    print("KERNEL_OK")
</pallas_src>

<mosaic_0001>
module attributes {stable_mosaic.version = 11 : i64} {
  func.func @_value_net_kernel(%arg0: i32, %arg1: memref<128x16xf32, #tpu.memory_space<vmem>>, %arg2: memref<16x128xbf16, #tpu.memory_space<vmem>>, %arg3: memref<1x128xf32, #tpu.memory_space<vmem>>, %arg4: memref<128x128xbf16, #tpu.memory_space<vmem>>, %arg5: memref<1x128xf32, #tpu.memory_space<vmem>>, %arg6: memref<1x128xbf16, #tpu.memory_space<vmem>>, %arg7: memref<1xf32, #tpu.memory_space<smem>>, %arg8: memref<1x128xf32, #tpu.memory_space<vmem>>) attributes {dimension_semantics = [#tpu.dimension_semantics<parallel>], iteration_bounds = array<i64: 2>, scalar_prefetch = 0 : i64, scratch_operands = 0 : i64, tpu.core_type = #tpu.core_type<tc>, window_params = [{transform_indices = @transform_0, window_bounds = array<i64: 128, 16>}, {pipeline_mode = #tpu.pipeline_mode<synchronous>, transform_indices = @transform_1, window_bounds = array<i64: 16, 128>}, {pipeline_mode = #tpu.pipeline_mode<synchronous>, transform_indices = @transform_2, window_bounds = array<i64: 1, 128>}, {pipeline_mode = #tpu.pipeline_mode<synchronous>, transform_indices = @transform_3, window_bounds = array<i64: 128, 128>}, {pipeline_mode = #tpu.pipeline_mode<synchronous>, transform_indices = @transform_4, window_bounds = array<i64: 1, 128>}, {pipeline_mode = #tpu.pipeline_mode<synchronous>, transform_indices = @transform_5, window_bounds = array<i64: 1, 128>}, {transform_indices = @transform_6, window_bounds = array<i64: 1>}, {transform_indices = @transform_7, window_bounds = array<i64: 1, 128>}]} {
    %c0 = arith.constant 0 : index
    %c0_0 = arith.constant 0 : index
    %0 = vector.load %arg1[%c0, %c0_0] : memref<128x16xf32, #tpu.memory_space<vmem>>, vector<128x16xf32>
    %1 = arith.truncf %0 : vector<128x16xf32> to vector<128x16xbf16>
    %c0_1 = arith.constant 0 : index
    %c0_2 = arith.constant 0 : index
    %2 = vector.load %arg2[%c0_1, %c0_2] : memref<16x128xbf16, #tpu.memory_space<vmem>>, vector<16x128xbf16>
    %cst = arith.constant dense<0.000000e+00> : vector<128x128xf32>
    %3 = tpu.matmul %1, %2, %cst {dimension_numbers = #tpu.dot_dimension_numbers<[1], [0], [0], [1], [0, 0, 1, 1], [], []>} : vector<128x16xbf16>, vector<16x128xbf16>, vector<128x128xf32> -> vector<128x128xf32>
    %c0_3 = arith.constant 0 : index
    %c0_4 = arith.constant 0 : index
    %4 = vector.load %arg3[%c0_3, %c0_4] : memref<1x128xf32, #tpu.memory_space<vmem>>, vector<1x128xf32>
    %5 = vector.broadcast %4 : vector<1x128xf32> to vector<128x128xf32>
    %6 = arith.addf %3, %5 : vector<128x128xf32>
    %cst_5 = arith.constant 0.000000e+00 : f32
    %7 = vector.broadcast %cst_5 : f32 to vector<128x128xf32>
    %8 = arith.maximumf %6, %7 : vector<128x128xf32>
    %9 = arith.truncf %8 : vector<128x128xf32> to vector<128x128xbf16>
    %c0_6 = arith.constant 0 : index
    %c0_7 = arith.constant 0 : index
    %10 = vector.load %arg4[%c0_6, %c0_7] : memref<128x128xbf16, #tpu.memory_space<vmem>>, vector<128x128xbf16>
    %cst_8 = arith.constant dense<0.000000e+00> : vector<128x128xf32>
    %11 = tpu.matmul %9, %10, %cst_8 {dimension_numbers = #tpu.dot_dimension_numbers<[1], [0], [0], [1], [0, 0, 1, 1], [], []>} : vector<128x128xbf16>, vector<128x128xbf16>, vector<128x128xf32> -> vector<128x128xf32>
    %c0_9 = arith.constant 0 : index
    %c0_10 = arith.constant 0 : index
    %12 = vector.load %arg5[%c0_9, %c0_10] : memref<1x128xf32, #tpu.memory_space<vmem>>, vector<1x128xf32>
    %13 = vector.broadcast %12 : vector<1x128xf32> to vector<128x128xf32>
    %14 = arith.addf %11, %13 : vector<128x128xf32>
    %cst_11 = arith.constant 0.000000e+00 : f32
    %15 = vector.broadcast %cst_11 : f32 to vector<128x128xf32>
    %16 = arith.maximumf %14, %15 : vector<128x128xf32>
    %c0_12 = arith.constant 0 : index
    %c0_13 = arith.constant 0 : index
    %17 = vector.load %arg6[%c0_12, %c0_13] : memref<1x128xbf16, #tpu.memory_space<vmem>>, vector<1x128xbf16>
    %18 = arith.truncf %16 : vector<128x128xf32> to vector<128x128xbf16>
    %cst_14 = arith.constant dense<0.000000e+00> : vector<1x128xf32>
    %19 = tpu.matmul %17, %18, %cst_14 {dimension_numbers = #tpu.dot_dimension_numbers<[1], [1], [0], [0], [0, 0, 1, 0], [], []>} : vector<1x128xbf16>, vector<128x128xbf16>, vector<1x128xf32> -> vector<1x128xf32>
    %c0_15 = arith.constant 0 : index
    %20 = memref.load %arg7[%c0_15] : memref<1xf32, #tpu.memory_space<smem>>
    %21 = vector.broadcast %20 : f32 to vector<1x128xf32>
    %22 = arith.addf %19, %21 : vector<1x128xf32>
    %c0_16 = arith.constant 0 : index
    %c0_17 = arith.constant 0 : index
    %23 = vector.load %arg8[%c0_16, %c0_17] : memref<1x128xf32, #tpu.memory_space<vmem>>, vector<1x128xf32>
    tpu.vector_store %arg8[%c0_16, %c0_17], %22 {strides = array<i32>} : memref<1x128xf32, #tpu.memory_space<vmem>>, vector<1x128xf32>,
    return
  }
  func.func @transform_0(%arg0: i32) -> (i32, i32) {
    %c0_i32 = arith.constant 0 : i32
    %c0_i32_0 = arith.constant 0 : i32
    return %arg0, %c0_i32 : i32, i32
  }
  func.func @transform_1(%arg0: i32) -> (i32, i32) {
    %c0_i32 = arith.constant 0 : i32
    %c0_i32_0 = arith.constant 0 : i32
    %c0_i32_1 = arith.constant 0 : i32
    return %c0_i32, %c0_i32_0 : i32, i32
  }
  func.func @transform_2(%arg0: i32) -> (i32, i32) {
    %c0_i32 = arith.constant 0 : i32
    %c0_i32_0 = arith.constant 0 : i32
    %c0_i32_1 = arith.constant 0 : i32
    return %c0_i32, %c0_i32_0 : i32, i32
  }
  func.func @transform_3(%arg0: i32) -> (i32, i32) {
    %c0_i32 = arith.constant 0 : i32
    %c0_i32_0 = arith.constant 0 : i32
    %c0_i32_1 = arith.constant 0 : i32
    return %c0_i32, %c0_i32_0 : i32, i32
  }
  func.func @transform_4(%arg0: i32) -> (i32, i32) {
    %c0_i32 = arith.constant 0 : i32
    %c0_i32_0 = arith.constant 0 : i32
    %c0_i32_1 = arith.constant 0 : i32
    return %c0_i32, %c0_i32_0 : i32, i32
  }
  func.func @transform_5(%arg0: i32) -> (i32, i32) {
    %c0_i32 = arith.constant 0 : i32
    %c0_i32_0 = arith.constant 0 : i32
    %c0_i32_1 = arith.constant 0 : i32
    return %c0_i32, %c0_i32_0 : i32, i32
  }
  func.func @transform_6(%arg0: i32) -> i32 {
    %c0_i32 = arith.constant 0 : i32
    %c0_i32_0 = arith.constant 0 : i32
    return %c0_i32 : i32
  }
  func.func @transform_7(%arg0: i32) -> (i32, i32) {
    %c0_i32 = arith.constant 0 : i32
    %c0_i32_0 = arith.constant 0 : i32
    return %c0_i32, %arg0 : i32, i32
  }
}

</mosaic_0001>

<llo_original>
// kernel: tpu_custom_call.1
$region0: #{tpu_custom_call.1}
  #allocation0 [shape = 'u32[]', space=smem, size = 0x4, offset = 0x4, fixed_abs, tag = 'smem constant byte address 0x4 - core index']
  #allocation1 [shape = 'u32[72,128]{1,0:T(1,128)}', space=vmem, size = 0x9000, scoped, tag = 'internal scratch']
  #allocation2 [shape = 'f32[1]{0:T(128)S(6)}', space=smem, size = 0x200, scoped, tag = 'scoped memory for tpu_custom_call.1']
  %s0 = inlined_call_operand.vmem [shape: f32[256,16], index: 0, kind: input, shape index: {}]
  %s1 = inlined_call_operand.vmem [shape: bf16[16,128], index: 1, kind: input, shape index: {}]
  %s2 = inlined_call_operand.vmem [shape: f32[1,128], index: 2, kind: input, shape index: {}]
  %s3 = inlined_call_operand.vmem [shape: bf16[128,128], index: 3, kind: input, shape index: {}]
  %s4 = inlined_call_operand.vmem [shape: f32[1,128], index: 4, kind: input, shape index: {}]
  %s5 = inlined_call_operand.vmem [shape: bf16[1,128], index: 5, kind: input, shape index: {}]
  %s6 = inlined_call_operand.<no memory space> [shape: f32[1], index: 6, kind: input, shape index: {}]
  %s7 = inlined_call_operand.hbm [shape: f32[1,256], index: 7, kind: output, shape index: {}]
  %s8 = sld [smem:[#allocation0]]
  $region61: #{tpu_custom_call.1} parent=0
    _
  %s10 = ssub.s32 1, %s8
  %s11 = scalar_select 0, %s10, %s8
  %12 = sst [smem:[#allocation2]] %s6
  $region1: #{tpu_custom_call.1} parent=0
    #allocation3 [shape = 'u8[1024]{0}', space=vmem, size = 0x400, scoped, tag = 'output window, operand 0']
    #allocation4 [shape = 's32[2]{0}', space=sflag, size = 0x8, scoped, tag = 'scoped memory for tpu_custom_call.1']
    %13 = vsyncpa [#allocation4], 0
    %s14 = scalar_lea.sflag [#allocation4], 1
    %15 = vsyncpa %s14, 0
    loop: start=0, step=1, limit=4
    $region2: #{tpu_custom_call.1} parent=1 // loop_pre_header
      _
    $region3: #{tpu_custom_call.1} parent=1 // loop_header
      %s17 = sphi 0, %s21
      %p18 = scmp.ge.s32.totalorder %s17, 4
      %s27 = sphi 0, %s29
      %s30 = sphi 0, %s27
      %s31 = sphi 0, %s30
      %s47 = sphi 0, %s31
      %s51 = sphi 0, %s51
      %s53 = sphi 0, %s51
      %s54 = sphi 0, %s53
      %s68 = sphi 0, %s54
      %s72 = sphi 0, %s72
      %s74 = sphi 0, %s72
      %s75 = sphi 0, %s74
      %s89 = sphi 0, %s75
      %s93 = sphi 0, %s93
      %s95 = sphi 0, %s93
      %s96 = sphi 0, %s95
      %s110 = sphi 0, %s96
      %s114 = sphi 0, %s114
      %s116 = sphi 0, %s114
      %s117 = sphi 0, %s116
      %s131 = sphi 0, %s117
      %s135 = sphi 0, %s135
      %s137 = sphi 0, %s135
      %s138 = sphi 0, %s137
      %s152 = sphi 0, %s138
      %s156 = sphi 0, %s156
      %s158 = sphi 0, %s156
      %s159 = sphi 0, %s158
      %s173 = sphi 0, %s159
      %s179 = sphi 0, %s181
      %s182 = sphi 0, %s179
      %s183 = sphi 0, %s182
      %s199 = sphi 0, %s183
    $region4: #{tpu_custom_call.1} parent=1 // loop_header_branch
      %20 = sbr.rel (%p18) target = $region8
    $region5: #{tpu_custom_call.1} parent=1 // loop_body
      %s22 = ssub.s32 %s17, 1
      %s23 = ssub.s32 %s17, 2
      %s24 = sadd.s32 %s17, 1
      %s25 = ssub.s32 %s17, %s24
      %p26 = scmp.eq.s32.totalorder %s25, 0
      %s28 = sadd.s32 %s27, 1
      %s29 = scalar_select %p26, %s27, %s28
      %p32 = pneg %p26
      %p33 = scmp.eq.s32.totalorder %s17, 1
      %p34 = por %p32, %p33
      %p35 = scmp.ne.s32.totalorder %s27, %s30
      %p36 = scmp.eq.s32.totalorder %s17, 0
      %p37 = por %p35, %p36
      %p38 = scmp.ne.s32.totalorder %s27, %s30
      %p39 = scmp.eq.s32.totalorder %s22, 1
      %p40 = por %p38, %p39
      %p41 = scmp.ne.s32.totalorder %s30, %s31
      %p42 = scmp.eq.s32.totalorder %s22, 0
      %p43 = por %p41, %p42
      %p44 = scmp.ne.s32.totalorder %s30, %s31
      %p45 = scmp.eq.s32.totalorder %s23, 1
      %p46 = por %p44, %p45
      %p48 = scmp.ne.s32.totalorder %s31, %s47
      %p49 = scmp.eq.s32.totalorder %s23, 0
      %p50 = por %p48, %p49
      %s52 = sadd.s32 %s51, 1
      %p55 = scmp.eq.s32.totalorder %s17, 1
      %p56 = scmp.ne.s32.totalorder %s51, %s53
      %p57 = scmp.eq.s32.totalorder %s17, 0
      %p58 = por %p56, %p57
      %p59 = scmp.ne.s32.totalorder %s51, %s53
      %p60 = scmp.eq.s32.totalorder %s22, 1
      %p61 = por %p59, %p60
      %p62 = scmp.ne.s32.totalorder %s53, %s54
      %p63 = scmp.eq.s32.totalorder %s22, 0
      %p64 = por %p62, %p63
      %p65 = scmp.ne.s32.totalorder %s53, %s54
      %p66 = scmp.eq.s32.totalorder %s23, 1
      %p67 = por %p65, %p66
      %p69 = scmp.ne.s32.totalorder %s54, %s68
      %p70 = scmp.eq.s32.totalorder %s23, 0
      %p71 = por %p69, %p70
      %s73 = sadd.s32 %s72, 1
      %p76 = scmp.eq.s32.totalorder %s17, 1
      %p77 = scmp.ne.s32.totalorder %s72, %s74
      %p78 = scmp.eq.s32.totalorder %s17, 0
      %p79 = por %p77, %p78
      %p80 = scmp.ne.s32.totalorder %s72, %s74
      %p81 = scmp.eq.s32.totalorder %s22, 1
      %p82 = por %p80, %p81
      %p83 = scmp.ne.s32.totalorder %s74, %s75
      %p84 = scmp.eq.s32.totalorder %s22, 0
      %p85 = por %p83, %p84
      %p86 = scmp.ne.s32.totalorder %s74, %s75
      %p87 = scmp.eq.s32.totalorder %s23, 1
      %p88 = por %p86, %p87
      %p90 = scmp.ne.s32.totalorder %s75, %s89
      %p91 = scmp.eq.s32.totalorder %s23, 0
      %p92 = por %p90, %p91
      %s94 = sadd.s32 %s93, 1
      %p97 = scmp.eq.s32.totalorder %s17, 1
      %p98 = scmp.ne.s32.totalorder %s93, %s95
      %p99 = scmp.eq.s32.totalorder %s17, 0
      %p100 = por %p98, %p99
      %p101 = scmp.ne.s32.totalorder %s93, %s95
      %p102 = scmp.eq.s32.totalorder %s22, 1
      %p103 = por %p101, %p102
      %p104 = scmp.ne.s32.totalorder %s95, %s96
      %p105 = scmp.eq.s32.totalorder %s22, 0
      %p106 = por %p104, %p105
      %p107 = scmp.ne.s32.totalorder %s95, %s96
      %p108 = scmp.eq.s32.totalorder %s23, 1
      %p109 = por %p107, %p108
      %p111 = scmp.ne.s32.totalorder %s96, %s110
      %p112 = scmp.eq.s32.totalorder %s23, 0
      %p113 = por %p111, %p112
      %s115 = sadd.s32 %s114, 1
      %p118 = scmp.eq.s32.totalorder %s17, 1
      %p119 = scmp.ne.s32.totalorder %s114, %s116
      %p120 = scmp.eq.s32.totalorder %s17, 0
      %p121 = por %p119, %p120
      %p122 = scmp.ne.s32.totalorder %s114, %s116
      %p123 = scmp.eq.s32.totalorder %s22, 1
      %p124 = por %p122, %p123
      %p125 = scmp.ne.s32.totalorder %s116, %s117
      %p126 = scmp.eq.s32.totalorder %s22, 0
      %p127 = por %p125, %p126
      %p128 = scmp.ne.s32.totalorder %s116, %s117
      %p129 = scmp.eq.s32.totalorder %s23, 1
      %p130 = por %p128, %p129
      %p132 = scmp.ne.s32.totalorder %s117, %s131
      %p133 = scmp.eq.s32.totalorder %s23, 0
      %p134 = por %p132, %p133
      %s136 = sadd.s32 %s135, 1
      %p139 = scmp.eq.s32.totalorder %s17, 1
      %p140 = scmp.ne.s32.totalorder %s135, %s137
      %p141 = scmp.eq.s32.totalorder %s17, 0
      %p142 = por %p140, %p141
      %p143 = scmp.ne.s32.totalorder %s135, %s137
      %p144 = scmp.eq.s32.totalorder %s22, 1
      %p145 = por %p143, %p144
      %p146 = scmp.ne.s32.totalorder %s137, %s138
      %p147 = scmp.eq.s32.totalorder %s22, 0
      %p148 = por %p146, %p147
      %p149 = scmp.ne.s32.totalorder %s137, %s138
      %p150 = scmp.eq.s32.totalorder %s23, 1
      %p151 = por %p149, %p150
      %p153 = scmp.ne.s32.totalorder %s138, %s152
      %p154 = scmp.eq.s32.totalorder %s23, 0
      %p155 = por %p153, %p154
      %s157 = sadd.s32 %s156, 1
      %p160 = scmp.eq.s32.totalorder %s17, 1
      %p161 = scmp.ne.s32.totalorder %s156, %s158
      %p162 = scmp.eq.s32.totalorder %s17, 0
      %p163 = por %p161, %p162
      %p164 = scmp.ne.s32.totalorder %s156, %s158
      %p165 = scmp.eq.s32.totalorder %s22, 1
      %p166 = por %p164, %p165
      %p167 = scmp.ne.s32.totalorder %s158, %s159
      %p168 = scmp.eq.s32.totalorder %s22, 0
      %p169 = por %p167, %p168
      %p170 = scmp.ne.s32.totalorder %s158, %s159
      %p171 = scmp.eq.s32.totalorder %s23, 1
      %p172 = por %p170, %p171
      %p174 = scmp.ne.s32.totalorder %s159, %s173
      %p175 = scmp.eq.s32.totalorder %s23, 0
      %p176 = por %p174, %p175
      %s177 = ssub.s32 %s17, %s24
      %p178 = scmp.eq.s32.totalorder %s177, 0
      %s180 = sadd.s32 %s179, 1
      %s181 = scalar_select %p178, %s179, %s180
      %p184 = pneg %p178
      %p185 = scmp.eq.s32.totalorder %s17, 1
      %p186 = por %p184, %p185
      %p187 = scmp.ne.s32.totalorder %s179, %s182
      %p188 = scmp.eq.s32.totalorder %s17, 0
      %p189 = por %p187, %p188
      %p190 = scmp.ne.s32.totalorder %s179, %s182
      %p191 = scmp.eq.s32.totalorder %s22, 1
      %p192 = por %p190, %p191
      %p193 = scmp.ne.s32.totalorder %s182, %s183
      %p194 = scmp.eq.s32.totalorder %s22, 0
      %p195 = por %p193, %p194
      %p196 = scmp.ne.s32.totalorder %s182, %s183
      %p197 = scmp.eq.s32.totalorder %s23, 1
      %p198 = por %p196, %p197
      %p200 = scmp.ne.s32.totalorder %s183, %s199
      %p201 = scmp.eq.s32.totalorder %s23, 0
      %p202 = por %p200, %p201
      %p203 = scmp.le.s32.totalorder 1, %s17
      %p204 = scmp.lt.s32.totalorder %s17, 3
      %p205 = pnand %p203, %p204
      %p206 = pneg %p205
      // Predicated region
      $region9: #{tpu_custom_call.1} parent=5 // pred_check
        _
      $region10: #{tpu_custom_call.1} parent=5 // pred_check_branch
        %208 = sbr.rel (%p205) target = $region12
      $region11: #{tpu_custom_call.1} parent=5 // pred_region
        %s209 = ssub.s32 %s17, 1
        // Predicated region
        $region13: #{tpu_custom_call.1} parent=11 // pred_check
          %p210 = pneg %p64
        $region14: #{tpu_custom_call.1} parent=11 // pred_check_branch
          %212 = sbr.rel (%p210) target = $region16
        $region15: #{tpu_custom_call.1} parent=11 // pred_region
          _
        $region16: #{tpu_custom_call.1} parent=11 // pred_fallthru
          _
        // Predicated region
        $region17: #{tpu_custom_call.1} parent=11 // pred_check
          %p213 = pneg %p85
        $region18: #{tpu_custom_call.1} parent=11 // pred_check_branch
          %215 = sbr.rel (%p213) target = $region20
        $region19: #{tpu_custom_call.1} parent=11 // pred_region
          _
        $region20: #{tpu_custom_call.1} parent=11 // pred_fallthru
          _
        // Predicated region
        $region21: #{tpu_custom_call.1} parent=11 // pred_check
          %p216 = pneg %p106
        $region22: #{tpu_custom_call.1} parent=11 // pred_check_branch
          %218 = sbr.rel (%p216) target = $region24
        $region23: #{tpu_custom_call.1} parent=11 // pred_region
          _
        $region24: #{tpu_custom_call.1} parent=11 // pred_fallthru
          _
        // Predicated region
        $region25: #{tpu_custom_call.1} parent=11 // pred_check
          %p219 = pneg %p127
        $region26: #{tpu_custom_call.1} parent=11 // pred_check_branch
          %221 = sbr.rel (%p219) target = $region28
        $region27: #{tpu_custom_call.1} parent=11 // pred_region
          _
        $region28: #{tpu_custom_call.1} parent=11 // pred_fallthru
          _
        // Predicated region
        $region29: #{tpu_custom_call.1} parent=11 // pred_check
          %p222 = pneg %p148
        $region30: #{tpu_custom_call.1} parent=11 // pred_check_branch
          %224 = sbr.rel (%p222) target = $region32
        $region31: #{tpu_custom_call.1} parent=11 // pred_region
          _
        $region32: #{tpu_custom_call.1} parent=11 // pred_fallthru
          _
        // Predicated region
        $region33: #{tpu_custom_call.1} parent=11 // pred_check
          %p225 = pneg %p169
        $region34: #{tpu_custom_call.1} parent=11 // pred_check_branch
          %227 = sbr.rel (%p225) target = $region36
        $region35: #{tpu_custom_call.1} parent=11 // pred_region
          _
        $region36: #{tpu_custom_call.1} parent=11 // pred_fallthru
          _
      $region12: #{tpu_custom_call.1} parent=5 // pred_fallthru
        _
      %p228 = scmp.lt.s32.totalorder %s17, 2
      // Predicated region
      $region37: #{tpu_custom_call.1} parent=5 // pred_check
        %p229 = pneg %p228
      $region38: #{tpu_custom_call.1} parent=5 // pred_check_branch
        %231 = sbr.rel (%p229) target = $region40
      $region39: #{tpu_custom_call.1} parent=5 // pred_region
        // Predicated region
        $region41: #{tpu_custom_call.1} parent=39 // pred_check
          %p232 = pneg %p37
        $region42: #{tpu_custom_call.1} parent=39 // pred_check_branch
          %234 = sbr.rel (%p232) target = $region44
        $region43: #{tpu_custom_call.1} parent=39 // pred_region
          %s235 = smul.u32 16, %s17
          %p236 = scmp.lt.s32.totalorder %s235, 31
          %s237 = scalar_select %p236, %s235, 31
          %s238 = smul.addr %s237, 8
          %s239 = scalar_lea.vmem %s0, %s238
          %s240 = smul.u32 16, %s17
        $region44: #{tpu_custom_call.1} parent=39 // pred_fallthru
          _
      $region40: #{tpu_custom_call.1} parent=5 // pred_fallthru
        _
      %p241 = scmp.le.s32.totalorder 1, %s17
      %p242 = scmp.lt.s32.totalorder %s17, 3
      %p243 = pnand %p241, %p242
      %p244 = pneg %p243
      // Predicated region
      $region45: #{tpu_custom_call.1} parent=5 // pred_check
        _
      $region46: #{tpu_custom_call.1} parent=5 // pred_check_branch
        %246 = sbr.rel (%p243) target = $region48
      $region47: #{tpu_custom_call.1} parent=5 // pred_region
        %s247 = ssub.s32 %s17, 1
        %s248 = smul.u32 16, %s22
        %p249 = scmp.lt.s32.totalorder %s248, 31
        %s250 = scalar_select %p249, %s248, 31
        %s251 = smul.addr %s250, 8
        %s252 = scalar_lea.vmem %s0, %s251
        %p253 = pneg %p43
        %p254 = pneg %p40
        %p255 = pneg %p64
        %p256 = pneg %p61
        %p257 = pneg %p85
        %p258 = pneg %p82
        %p259 = pneg %p106
        %p260 = pneg %p103
        %p261 = pneg %p127
        %p262 = pneg %p124
        %p263 = pneg %p148
        %p264 = pneg %p145
        %p265 = pneg %p169
        %p266 = pneg %p166
        %p267 = pneg %p195
        %p268 = pneg %p192
        %s269 = sand.u32 %s182, 1
        %s270 = scalar_lea.sflag [#allocation4], %s269
        %s271 = sand.u32 %s182, 1
        %s272 = scalar_lea.vmem [#allocation3], %s271
        %s273 = smul.u32 16, %s22
        %p274 = scmp.lt.s32.totalorder %s273, 31
        %s275 = scalar_select %p274, %s273, 31
        %s276 = smul.addr %s275, 8
        %s277 = scalar_lea.vmem %s0, %s276
        %s278 = smul.u32 16, %s22
        %v280 = vld [vmem:[%s277] sm:$0xff]
        %v281 = vld [vmem:[%s277 + $0x8] sm:$0xff]
        %v282 = vld [vmem:[%s277 + $0x10] sm:$0xff]
        %v283 = vld [vmem:[%s277 + $0x18] sm:$0xff]
        %v284 = vld [vmem:[%s277 + $0x20] sm:$0xff]
        %v285 = vld [vmem:[%s277 + $0x28] sm:$0xff]
        %v286 = vld [vmem:[%s277 + $0x30] sm:$0xff]
        %v287 = vld [vmem:[%s277 + $0x38] sm:$0xff]
        %v288 = vld [vmem:[%s277 + $0x40] sm:$0xff]
        %v289 = vld [vmem:[%s277 + $0x48] sm:$0xff]
        %v290 = vld [vmem:[%s277 + $0x50] sm:$0xff]
        %v291 = vld [vmem:[%s277 + $0x58] sm:$0xff]
        %v292 = vld [vmem:[%s277 + $0x60] sm:$0xff]
        %v293 = vld [vmem:[%s277 + $0x68] sm:$0xff]
        %v294 = vld [vmem:[%s277 + $0x70] sm:$0xff]
        %v295 = vld [vmem:[%s277 + $0x78] sm:$0xff]
        %v296 = vpack.c.bf16 %v281, %v280
        %v297 = vpack.c.bf16 %v283, %v282
        %v298 = vpack.c.bf16 %v285, %v284
        %v299 = vpack.c.bf16 %v287, %v286
        %v300 = vpack.c.bf16 %v289, %v288
        %v301 = vpack.c.bf16 %v291, %v290
        %v302 = vpack.c.bf16 %v293, %v292
        %v303 = vpack.c.bf16 %v295, %v294
        %v304 = vld [vmem:[%s1] sm:$0xf]
        %v305 = vld [vmem:[%s1 + $0x4] sm:$0xf]
        %v306 = vld [vmem:[%s2] sm:$0x1]
        %v308 = vperm.slane %v306, 0
        %v312 = vunpack.c.l.b16 %v304
        %v313 = vunpack.c.l.b16 %v305
        %v314 = vpack.c.b16 %v313, %v312
        %vm316 = vcmask 130048
        %v318 = vsel %vm316, %v296, 0
        %v321 = vsel %vm316, %v297, 0
        %v324 = vsel %vm316, %v298, 0
        %v327 = vsel %vm316, %v299, 0
        %v330 = vsel %vm316, %v300, 0
        %v333 = vsel %vm316, %v301, 0
        %v336 = vsel %vm316, %v302, 0
        %v339 = vsel %vm316, %v303, 0
        %341 = vmatpush.bf16.msra.mxu0 0
        %342 = vmatpush.bf16.msra.mxu0 0
        %343 = vmatpush.bf16.msra.mxu0 0
        %344 = vmatpush.bf16.msra.mxu0 0
        %345 = vmatpush.bf16.msra.mxu0 0
        %346 = vmatpush.bf16.msra.mxu0 0
        %347 = vmatpush.bf16.msra.mxu0 0
        %348 = vmatpush.bf16.msra.mxu0 %v314
        %349 = vmatmul.bf16.gmra.mxu0 %v318
        %v350 = vpop.f32.mrf.mxu0
        %v351 = vadd.f32 %v308, %v350
        %v352 = vpop.f32.mrf.mxu0
        %v353 = vadd.f32 %v308, %v352
        %354 = vmatmul.bf16.gmra.mxu0 %v321
        %v355 = vpop.f32.mrf.mxu0
        %v356 = vadd.f32 %v308, %v355
        %v357 = vpop.f32.mrf.mxu0
        %v358 = vadd.f32 %v308, %v357
        %359 = vmatmul.bf16.gmra.mxu0 %v324
        %v360 = vpop.f32.mrf.mxu0
        %v361 = vadd.f32 %v308, %v360
        %v362 = vpop.f32.mrf.mxu0
        %v363 = vadd.f32 %v308, %v362
        %364 = vmatmul.bf16.gmra.mxu0 %v327
        %v365 = vpop.f32.mrf.mxu0
        %v366 = vadd.f32 %v308, %v365
        %v367 = vpop.f32.mrf.mxu0
        %v368 = vadd.f32 %v308, %v367
        %369 = vmatmul.bf16.gmra.mxu0 %v330
        %v370 = vpop.f32.mrf.mxu0
        %v371 = vadd.f32 %v308, %v370
        %v372 = vpop.f32.mrf.mxu0
        %v373 = vadd.f32 %v308, %v372
        %374 = vmatmul.bf16.gmra.mxu0 %v333
        %v375 = vpop.f32.mrf.mxu0
        %v376 = vadd.f32 %v308, %v375
        %v377 = vpop.f32.mrf.mxu0
        %v378 = vadd.f32 %v308, %v377
        %379 = vmatmul.bf16.gmra.mxu0 %v336
        %v380 = vpop.f32.mrf.mxu0
        %v381 = vadd.f32 %v308, %v380
        %v382 = vpop.f32.mrf.mxu0
        %v383 = vadd.f32 %v308, %v382
        %384 = vmatmul.bf16.gmra.mxu0 %v339
        %v385 = vpop.f32.mrf.mxu0
        %v386 = vadd.f32 %v308, %v385
        %v387 = vpop.f32.mrf.mxu0
        %v388 = vadd.f32 %v308, %v387
        %389 = vdwg.mxu0
        %v390 = vmax.f32 %v351, 0.0
        %v391 = vmax.f32 %v353, 0.0
        %v392 = vmax.f32 %v356, 0.0
        %v393 = vmax.f32 %v358, 0.0
        %v394 = vmax.f32 %v361, 0.0
        %v395 = vmax.f32 %v363, 0.0
        %v396 = vmax.f32 %v366, 0.0
        %v397 = vmax.f32 %v368, 0.0
        %v398 = vmax.f32 %v371, 0.0
        %v399 = vmax.f32 %v373, 0.0
        %v400 = vmax.f32 %v376, 0.0
        %v401 = vmax.f32 %v378, 0.0
        %v402 = vmax.f32 %v381, 0.0
        %v403 = vmax.f32 %v383, 0.0
        %v404 = vmax.f32 %v386, 0.0
        %v405 = vmax.f32 %v388, 0.0
        %v406 = vpack.c.bf16 %v391, %v390
        %v407 = vpack.c.bf16 %v393, %v392
        %v408 = vpack.c.bf16 %v395, %v394
        %v409 = vpack.c.bf16 %v397, %v396
        %v410 = vpack.c.bf16 %v399, %v398
        %v411 = vpack.c.bf16 %v401, %v400
        %v412 = vpack.c.bf16 %v403, %v402
        %v413 = vpack.c.bf16 %v405, %v404
        %v414 = vld [vmem:[%s3] sm:$0xf]
        %v415 = vld [vmem:[%s3 + $0x4] sm:$0xf]
        %v416 = vld [vmem:[%s3 + $0x8] sm:$0xf]
        %v417 = vld [vmem:[%s3 + $0xc] sm:$0xf]
        %v418 = vld [vmem:[%s3 + $0x10] sm:$0xf]
        %v419 = vld [vmem:[%s3 + $0x14] sm:$0xf]
        %v420 = vld [vmem:[%s3 + $0x18] sm:$0xf]
        %v421 = vld [vmem:[%s3 + $0x1c] sm:$0xf]
        %v422 = vld [vmem:[%s3 + $0x20] sm:$0xf]
        %v423 = vld [vmem:[%s3 + $0x24] sm:$0xf]
        %v424 = vld [vmem:[%s3 + $0x28] sm:$0xf]
        %v425 = vld [vmem:[%s3 + $0x2c] sm:$0xf]
        %v426 = vld [vmem:[%s3 + $0x30] sm:$0xf]
        %v427 = vld [vmem:[%s3 + $0x34] sm:$0xf]
        %v428 = vld [vmem:[%s3 + $0x38] sm:$0xf]
        %v429 = vld [vmem:[%s3 + $0x3c] sm:$0xf]
        %v430 = vld [vmem:[%s4] sm:$0x1]
        %v432 = vperm.slane %v430, 0
        %v450 = vunpack.c.l.b16 %v414
        %v451 = vunpack.c.l.b16 %v415
        %v452 = vunpack.c.l.b16 %v416
        %v453 = vunpack.c.l.b16 %v417
        %v454 = vunpack.c.l.b16 %v418
        %v455 = vunpack.c.l.b16 %v419
        %v456 = vunpack.c.l.b16 %v420
        %v457 = vunpack.c.l.b16 %v421
        %v458 = vunpack.c.l.b16 %v422
        %v459 = vunpack.c.l.b16 %v423
        %v460 = vunpack.c.l.b16 %v424
        %v461 = vunpack.c.l.b16 %v425
        %v462 = vunpack.c.l.b16 %v426
        %v463 = vunpack.c.l.b16 %v427
        %v464 = vunpack.c.l.b16 %v428
        %v465 = vunpack.c.l.b16 %v429
        %v466 = vpack.c.b16 %v451, %v450
        %v467 = vpack.c.b16 %v453, %v452
        %v468 = vpack.c.b16 %v455, %v454
        %v469 = vpack.c.b16 %v457, %v456
        %v470 = vpack.c.b16 %v459, %v458
        %v471 = vpack.c.b16 %v461, %v460
        %v472 = vpack.c.b16 %v463, %v462
        %v473 = vpack.c.b16 %v465, %v464
        %482 = vmatpush.bf16.msra.mxu0 %v473
        %483 = vmatpush.bf16.msra.mxu0 %v472
        %484 = vmatpush.bf16.msra.mxu0 %v471
        %485 = vmatpush.bf16.msra.mxu0 %v470
        %486 = vmatpush.bf16.msra.mxu0 %v469
        %487 = vmatpush.bf16.msra.mxu0 %v468
        %488 = vmatpush.bf16.msra.mxu0 %v467
        %489 = vmatpush.bf16.msra.mxu0 %v466
        %490 = vmatmul.bf16.gmra.mxu0 %v406
        %v491 = vpop.f32.mrf.mxu0
        %v492 = vadd.f32 %v432, %v491
        %v493 = vpop.f32.mrf.mxu0
        %v494 = vadd.f32 %v432, %v493
        %495 = vmatmul.bf16.gmra.mxu0 %v407
        %v496 = vpop.f32.mrf.mxu0
        %v497 = vadd.f32 %v432, %v496
        %v498 = vpop.f32.mrf.mxu0
        %v499 = vadd.f32 %v432, %v498
        %500 = vmatmul.bf16.gmra.mxu0 %v408
        %v501 = vpop.f32.mrf.mxu0
        %v502 = vadd.f32 %v432, %v501
        %v503 = vpop.f32.mrf.mxu0
        %v504 = vadd.f32 %v432, %v503
        %505 = vmatmul.bf16.gmra.mxu0 %v409
        %v506 = vpop.f32.mrf.mxu0
        %v507 = vadd.f32 %v432, %v506
        %v508 = vpop.f32.mrf.mxu0
        %v509 = vadd.f32 %v432, %v508
        %510 = vmatmul.bf16.gmra.mxu0 %v410
        %v511 = vpop.f32.mrf.mxu0
        %v512 = vadd.f32 %v432, %v511
        %v513 = vpop.f32.mrf.mxu0
        %v514 = vadd.f32 %v432, %v513
        %515 = vmatmul.bf16.gmra.mxu0 %v411
        %v516 = vpop.f32.mrf.mxu0
        %v517 = vadd.f32 %v432, %v516
        %v518 = vpop.f32.mrf.mxu0
        %v519 = vadd.f32 %v432, %v518
        %520 = vmatmul.bf16.gmra.mxu0 %v412
        %v521 = vpop.f32.mrf.mxu0
        %v522 = vadd.f32 %v432, %v521
        %v523 = vpop.f32.mrf.mxu0
        %v524 = vadd.f32 %v432, %v523
        %525 = vmatmul.bf16.gmra.mxu0 %v413
        %v526 = vpop.f32.mrf.mxu0
        %v527 = vadd.f32 %v432, %v526
        %v528 = vpop.f32.mrf.mxu0
        %v529 = vadd.f32 %v432, %v528
        %530 = vdwg.mxu0
        %v531 = vmax.f32 %v492, 0.0
        %v532 = vmax.f32 %v494, 0.0
        %v533 = vmax.f32 %v497, 0.0
        %v534 = vmax.f32 %v499, 0.0
        %v535 = vmax.f32 %v502, 0.0
        %v536 = vmax.f32 %v504, 0.0
        %v537 = vmax.f32 %v507, 0.0
        %v538 = vmax.f32 %v509, 0.0
        %v539 = vmax.f32 %v512, 0.0
        %v540 = vmax.f32 %v514, 0.0
        %v541 = vmax.f32 %v517, 0.0
        %v542 = vmax.f32 %v519, 0.0
        %v543 = vmax.f32 %v522, 0.0
        %v544 = vmax.f32 %v524, 0.0
        %v545 = vmax.f32 %v527, 0.0
        %v546 = vmax.f32 %v529, 0.0
        %v547 = vld [vmem:[%s5] sm:$0x1]
        %v548 = vpack.c.bf16 %v532, %v531
        %v549 = vpack.c.bf16 %v534, %v533
        %v550 = vpack.c.bf16 %v536, %v535
        %v551 = vpack.c.bf16 %v538, %v537
        %v552 = vpack.c.bf16 %v540, %v539
        %v553 = vpack.c.bf16 %v542, %v541
        %v554 = vpack.c.bf16 %v544, %v543
        %v555 = vpack.c.bf16 %v546, %v545
        %s556 = sld [smem:[#allocation2]]
        %v557 = vstv %s556
        %558 = vmatpush.bf16.xpose.msra.mxu0 %v555
        %559 = vmatpush.bf16.xpose.msra.mxu0 %v554
        %560 = vmatpush.bf16.xpose.msra.mxu0 %v553
        %561 = vmatpush.bf16.xpose.msra.mxu0 %v552
        %562 = vmatpush.bf16.xpose.msra.mxu0 %v551
        %563 = vmatpush.bf16.xpose.msra.mxu0 %v550
        %564 = vmatpush.bf16.xpose.msra.mxu0 %v549
        %565 = vmatpush.bf16.xpose.msra.mxu0 %v548
        %566 = vmatmul.bf16.gmra.mxu0 %v547
        %v567 = vpop.f32.mrf.mxu0
        %v568 = vadd.f32 %v557, %v567
        %v569 = vpop.f32.mrf.mxu0
        %570 = vdwg.mxu0
        %571 = vst [vmem:[%s272] sm:$0x1] %v568
        %s572 = sand.u32 %s182, 1
        %s573 = scalar_lea.sflag [#allocation4], %s572
        %s574 = sand.u32 %s182, 1
        %s575 = scalar_lea.vmem [#allocation3], %s574
        // Predicated region
        $region49: #{tpu_custom_call.1} parent=47 // pred_check
          %p576 = pneg %p192
        $region50: #{tpu_custom_call.1} parent=47 // pred_check_branch
          %578 = sbr.rel (%p576) target = $region52
        $region51: #{tpu_custom_call.1} parent=47 // pred_region
          %580 = vsyncadd %s573, 0
          %s581 = scalar_lea.hbm %s7, %s22
          %s583 = sshll.u32 %s575, 4
          %s584 = int_to_ptr.vmem [resolvable:$true] %s583
          %s585 = sshll.u32 %s581, 4
          %s586 = int_to_ptr.hbm [resolvable:$true] %s585
          %588 = dma.vmem_to_hbm [thread:$0]  %s584, 16, %s586, %s573
        $region52: #{tpu_custom_call.1} parent=47 // pred_fallthru
          _
      $region48: #{tpu_custom_call.1} parent=5 // pred_fallthru
        _
      %p589 = scmp.le.s32.totalorder 2, %s17
      // Predicated region
      $region53: #{tpu_custom_call.1} parent=5 // pred_check
        %p590 = pneg %p589
      $region54: #{tpu_custom_call.1} parent=5 // pred_check_branch
        %592 = sbr.rel (%p590) target = $region56
      $region55: #{tpu_custom_call.1} parent=5 // pred_region
        %s593 = ssub.s32 %s17, 2
        // Predicated region
        $region57: #{tpu_custom_call.1} parent=55 // pred_check
          %p594 = pneg %p198
        $region58: #{tpu_custom_call.1} parent=55 // pred_check_branch
          %596 = sbr.rel (%p594) target = $region60
        $region59: #{tpu_custom_call.1} parent=55 // pred_region
          %s597 = sand.u32 %s183, 1
          %s598 = scalar_lea.sflag [#allocation4], %s597
          %s599 = sand.u32 %s183, 1
          %s600 = scalar_lea.vmem [#allocation3], %s599
          %602 = dma.done %s598, 16
        $region60: #{tpu_custom_call.1} parent=55 // pred_fallthru
          _
      $region56: #{tpu_custom_call.1} parent=5 // pred_fallthru
        _
    $region6: #{tpu_custom_call.1} parent=1 // loop_footer
      %s21 = sadd.s32 1, %s17
    $region7: #{tpu_custom_call.1} parent=1 // loop_footer_branch
      %16 = sbr.rel target = $region3
    $region8: #{tpu_custom_call.1} parent=1 // loop_exit
      _
    %603 = vsyncpa [#allocation4], 1
    %s604 = scalar_lea.sflag [#allocation4], 1
    %605 = vsyncpa %s604, 1

</llo_original>
